<compile_context>
chip_gen: v5e
topology: v5e:2x2
jax: 0.10.0
libtpu: 0.0.40
codegen_flags: <defaults>
</compile_context>

<pallas_src>
import jax
import jax.numpy as jnp
from jax.experimental import pallas as pl
from jax.experimental.pallas import tpu as pltpu


def _upsample_kernel(r_ref, x_ref, o_ref):
    # r_ref: (G*W, G*sh*W_out)   0/1 selection matrix, block-diagonal kron(I_G, rw)
    # x_ref: (TM, G*W)           TM collapsed (b, c, h-group) rows
    # o_ref: (TM, G*sh*W_out)    lane-dense upsampled rows
    o_ref[...] = jnp.dot(x_ref[...], r_ref[...], preferred_element_type=jnp.float32)


def _round_up(x, m):
    return (x + m - 1) // m * m


def nearest_upsampling(x, size=(1, 1)):
    """Nearest-neighbor upsampling of an NCHW tensor by integer factors `size`.

    Matches NearestUpsampling.forward: out[b, c, h, w] = x[b, c, h // sh, w // sw],
    returned as float32.
    """
    sh, sw = int(size[0]), int(size[1])
    B, C, H, W = x.shape
    H_out, W_out = H * sh, W * sw

    if sh == 1 and sw == 1:
        return x.astype(jnp.float32)

    # --- choose G: number of input rows folded into the lane dimension --------
    lane_unit = sh * W_out                      # output lanes produced per input row
    divisors = [g for g in range(1, H + 1) if H % g == 0]
    G = None
    for g in divisors:                          # best: an exact multiple of 128 lanes
        if g * lane_unit <= 4096 and (g * lane_unit) % 128 == 0:
            G = g
            break
    if G is None:                               # otherwise: at least 128 lanes
        for g in divisors:
            if 128 <= g * lane_unit <= 4096:
                G = g
                break
    if G is None:
        G = 1

    lanes_in = G * W
    lanes_out = G * lane_unit
    M = (B * C * H) // G

    # --- flat 2-D views (pure reshapes, no transpose) --------------------------
    x2d = x.astype(jnp.float32).reshape(M, lanes_in)

    # 0/1 selection: rw[w, r*W_out + wo] = (w == wo // sw); R = kron(I_G, rw).
    rw = (jnp.arange(W, dtype=jnp.int32)[:, None]
          == (jnp.arange(lane_unit, dtype=jnp.int32)[None, :] % W_out) // sw
          ).astype(jnp.float32)                                    # (W, sh*W_out)
    r_mat = jnp.kron(jnp.eye(G, dtype=jnp.float32), rw)            # (G*W, G*sh*W_out)

    # --- row tiling: big M tiles, bounded VMEM ----------------------------------
    def vmem_bytes(tm):      # double-buffered in/out tiles + (double-buffered) R
        return 4 * (2 * tm * lanes_in + 2 * tm * lanes_out + 2 * lanes_in * lanes_out)

    TM = min(512, _round_up(M, 8))
    while TM > 8 and vmem_bytes(TM) > 24 * 1024 * 1024:
        TM = max(8, TM // 2)
    Mp = _round_up(M, TM)
    if Mp != M:
        x2d = jnp.pad(x2d, ((0, Mp - M), (0, 0)))

    vmem_limit = int(min(64 * 1024 * 1024,
                         max(16 * 1024 * 1024, vmem_bytes(TM) + 4 * 1024 * 1024)))

    out2d = pl.pallas_call(
        _upsample_kernel,
        out_shape=jax.ShapeDtypeStruct((Mp, lanes_out), jnp.float32),
        grid_spec=pltpu.PrefetchScalarGridSpec(
            num_scalar_prefetch=0,
            grid=(Mp // TM,),
            in_specs=[
                pl.BlockSpec((lanes_in, lanes_out), lambda i: (0, 0)),  # R (constant block)
                pl.BlockSpec((TM, lanes_in), lambda i: (i, 0)),
            ],
            out_specs=pl.BlockSpec((TM, lanes_out), lambda i: (i, 0)),
        ),
        compiler_params=pltpu.CompilerParams(
            dimension_semantics=("parallel",),       # shards across TensorCores on v7x
            vmem_limit_bytes=vmem_limit,
        ),
    )(r_mat, x2d)

    if Mp != M:
        out2d = out2d[:M]
    # (M, G*sh*W_out) row-major == (B, C, H//G, G, sh, W_out) row-major == NCHW output.
    return out2d.reshape(B, C, H_out, W_out)


if __name__ == "__main__":
    key = jax.random.PRNGKey(0)
    B, C, H, W = 2, 4, 16, 16
    size = (2, 2)

    x = jax.random.normal(key, (B, C, H, W), dtype=jnp.float32)

    out = nearest_upsampling(x, size=size)
    out = jax.block_until_ready(out)

    # Reference (pure JAX) nearest-neighbor upsample, mirroring the torch loops.
    ref = jnp.repeat(jnp.repeat(x, size[0], axis=2), size[1], axis=3).astype(jnp.float32)

    assert out.shape == (B, C, H * size[0], W * size[1]), out.shape
    assert out.dtype == jnp.float32
    assert jnp.allclose(out, ref, atol=1e-6), "mismatch vs reference"

    print("KERNEL_OK")
</pallas_src>

<mosaic_0001>
module attributes {stable_mosaic.version = 11 : i64} {
  func.func @_upsample_kernel(%arg0: i32, %arg1: memref<32x128xf32, #tpu.memory_space<vmem>>, %arg2: memref<64x32xf32, #tpu.memory_space<vmem>>, %arg3: memref<64x128xf32, #tpu.memory_space<vmem>>) attributes {dimension_semantics = [#tpu.dimension_semantics<parallel>], iteration_bounds = array<i64: 1>, scalar_prefetch = 0 : i64, scratch_operands = 0 : i64, tpu.core_type = #tpu.core_type<tc>, window_params = [{pipeline_mode = #tpu.pipeline_mode<synchronous>, transform_indices = @transform_0, window_bounds = array<i64: 32, 128>}, {transform_indices = @transform_1, window_bounds = array<i64: 64, 32>}, {transform_indices = @transform_2, window_bounds = array<i64: 64, 128>}]} {
    %c0 = arith.constant 0 : index
    %c0_0 = arith.constant 0 : index
    %0 = vector.load %arg2[%c0, %c0_0] : memref<64x32xf32, #tpu.memory_space<vmem>>, vector<64x32xf32>
    %c0_1 = arith.constant 0 : index
    %c0_2 = arith.constant 0 : index
    %1 = vector.load %arg1[%c0_1, %c0_2] : memref<32x128xf32, #tpu.memory_space<vmem>>, vector<32x128xf32>
    %cst = arith.constant dense<0.000000e+00> : vector<64x128xf32>
    %2 = tpu.matmul %0, %1, %cst {dimension_numbers = #tpu.dot_dimension_numbers<[1], [0], [0], [1], [0, 0, 1, 1], [], []>} : vector<64x32xf32>, vector<32x128xf32>, vector<64x128xf32> -> vector<64x128xf32>
    %c0_3 = arith.constant 0 : index
    %c0_4 = arith.constant 0 : index
    %3 = vector.load %arg3[%c0_3, %c0_4] : memref<64x128xf32, #tpu.memory_space<vmem>>, vector<64x128xf32>
    tpu.vector_store %arg3[%c0_3, %c0_4], %2 {strides = array<i32>} : memref<64x128xf32, #tpu.memory_space<vmem>>, vector<64x128xf32>,
    return
  }
  func.func @transform_0(%arg0: i32) -> (i32, i32) {
    %c0_i32 = arith.constant 0 : i32
    %c0_i32_0 = arith.constant 0 : i32
    %c0_i32_1 = arith.constant 0 : i32
    return %c0_i32, %c0_i32_0 : i32, i32
  }
  func.func @transform_1(%arg0: i32) -> (i32, i32) {
    %c0_i32 = arith.constant 0 : i32
    %c0_i32_0 = arith.constant 0 : i32
    return %arg0, %c0_i32 : i32, i32
  }
  func.func @transform_2(%arg0: i32) -> (i32, i32) {
    %c0_i32 = arith.constant 0 : i32
    %c0_i32_0 = arith.constant 0 : i32
    return %arg0, %c0_i32 : i32, i32
  }
}

</mosaic_0001>

<llo_original>
// kernel: tpu_custom_call.1
$region0: #{tpu_custom_call.1}
  #allocation0 [shape = 'u32[]', space=smem, size = 0x4, offset = 0x4, fixed_abs, tag = 'smem constant byte address 0x4 - core index']
  #allocation1 [shape = 'u32[72,128]{1,0:T(1,128)}', space=vmem, size = 0x9000, scoped, tag = 'internal scratch']
  %s0 = inlined_call_operand.vmem [shape: f32[32,128], index: 0, kind: input, shape index: {}]
  %s1 = inlined_call_operand.vmem [shape: f32[64,32], index: 1, kind: input, shape index: {}]
  %s2 = inlined_call_operand.hbm [shape: f32[64,128], index: 2, kind: output, shape index: {}]
  %s3 = sld [smem:[#allocation0]]
  $region18: #{tpu_custom_call.1} parent=0
    _
  %s5 = ssub.s32 1, %s3
  %s6 = scalar_select 0, %s5, %s3
  $region1: #{tpu_custom_call.1} parent=0
    #allocation2 [shape = 'u8[32768]{0}', space=vmem, size = 0x8000, scoped, tag = 'output window, operand 0, single buffered']
    #allocation3 [shape = 's32[1]{0}', space=sflag, size = 0x4, scoped, tag = 'scoped memory for tpu_custom_call.1']
    %7 = vsyncpa [#allocation3], 0
    // Predicated region
    $region2: #{tpu_custom_call.1} parent=1 // pred_check
      _
    $region3: #{tpu_custom_call.1} parent=1 // pred_check_branch
      %9 = sbr.rel (0) target = $region5
    $region4: #{tpu_custom_call.1} parent=1 // pred_region
      _
    $region5: #{tpu_custom_call.1} parent=1 // pred_fallthru
      _
    // Predicated region
    $region6: #{tpu_custom_call.1} parent=1 // pred_check
      _
    $region7: #{tpu_custom_call.1} parent=1 // pred_check_branch
      %11 = sbr.rel (0) target = $region9
    $region8: #{tpu_custom_call.1} parent=1 // pred_region
      _
    $region9: #{tpu_custom_call.1} parent=1 // pred_fallthru
      _
    %v12 = vld [vmem:[%s1] sm:$0xff]
    %v13 = vld [vmem:[%s1 + $0x8] sm:$0xff]
    %v14 = vld [vmem:[%s1 + $0x10] sm:$0xff]
    %v15 = vld [vmem:[%s1 + $0x18] sm:$0xff]
    %v16 = vld [vmem:[%s1 + $0x20] sm:$0xff]
    %v17 = vld [vmem:[%s1 + $0x28] sm:$0xff]
    %v18 = vld [vmem:[%s1 + $0x30] sm:$0xff]
    %v19 = vld [vmem:[%s1 + $0x38] sm:$0xff]
    %v20 = vld [vmem:[%s0] sm:$0xff]
    %v21 = vld [vmem:[%s0 + $0x8] sm:$0xff]
    %v22 = vld [vmem:[%s0 + $0x10] sm:$0xff]
    %v23 = vld [vmem:[%s0 + $0x18] sm:$0xff]
    %vm24 = vcmask 261120
    %v26 = vsel %vm24, %v12, 0
    %v29 = vsel %vm24, %v13, 0
    %v32 = vsel %vm24, %v14, 0
    %v35 = vsel %vm24, %v15, 0
    %v38 = vsel %vm24, %v16, 0
    %v41 = vsel %vm24, %v17, 0
    %v44 = vsel %vm24, %v18, 0
    %v47 = vsel %vm24, %v19, 0
    %49 = vmatpush.msra.mxu0 0.0
    %50 = vmatpush.msra.mxu0 0.0
    %51 = vmatpush.msra.mxu0 0.0
    %52 = vmatpush.msra.mxu0 0.0
    %53 = vmatpush.msra.mxu0 0.0
    %54 = vmatpush.msra.mxu0 0.0
    %55 = vmatpush.msra.mxu0 0.0
    %56 = vmatpush.msra.mxu0 0.0
    %57 = vmatpush.msra.mxu0 0.0
    %58 = vmatpush.msra.mxu0 0.0
    %59 = vmatpush.msra.mxu0 0.0
    %60 = vmatpush.msra.mxu0 0.0
    %61 = vmatpush.msra.mxu0 %v23
    %62 = vmatpush.msra.mxu0 %v22
    %63 = vmatpush.msra.mxu0 %v21
    %64 = vmatpush.msra.mxu0 %v20
    %65 = vmatmul.f32.gmra.mxu0 %v26
    %v66 = vpop.f32.mrf.mxu0
    %v67 = vadd.f32 0.0, %v66
    %68 = vmatmul.f32.gmra.mxu0 %v29
    %v69 = vpop.f32.mrf.mxu0
    %v70 = vadd.f32 0.0, %v69
    %71 = vmatmul.f32.gmra.mxu0 %v32
    %v72 = vpop.f32.mrf.mxu0
    %v73 = vadd.f32 0.0, %v72
    %74 = vmatmul.f32.gmra.mxu0 %v35
    %v75 = vpop.f32.mrf.mxu0
    %v76 = vadd.f32 0.0, %v75
    %77 = vmatmul.f32.gmra.mxu0 %v38
    %v78 = vpop.f32.mrf.mxu0
    %v79 = vadd.f32 0.0, %v78
    %80 = vmatmul.f32.gmra.mxu0 %v41
    %v81 = vpop.f32.mrf.mxu0
    %v82 = vadd.f32 0.0, %v81
    %83 = vmatmul.f32.gmra.mxu0 %v44
    %v84 = vpop.f32.mrf.mxu0
    %v85 = vadd.f32 0.0, %v84
    %86 = vmatmul.f32.gmra.mxu0 %v47
    %v87 = vpop.f32.mrf.mxu0
    %v88 = vadd.f32 0.0, %v87
    %89 = vdwg.mxu0
    %90 = vst [vmem:[#allocation2] sm:$0xff] %v67
    %91 = vst [vmem:[#allocation2 + $0x8] sm:$0xff] %v70
    %92 = vst [vmem:[#allocation2 + $0x10] sm:$0xff] %v73
    %93 = vst [vmem:[#allocation2 + $0x18] sm:$0xff] %v76
    %94 = vst [vmem:[#allocation2 + $0x20] sm:$0xff] %v79
    %95 = vst [vmem:[#allocation2 + $0x28] sm:$0xff] %v82
    %96 = vst [vmem:[#allocation2 + $0x30] sm:$0xff] %v85
    %97 = vst [vmem:[#allocation2 + $0x38] sm:$0xff] %v88
    // Predicated region
    $region10: #{tpu_custom_call.1} parent=1 // pred_check
      _
    $region11: #{tpu_custom_call.1} parent=1 // pred_check_branch
      %99 = sbr.rel (0) target = $region13
    $region12: #{tpu_custom_call.1} parent=1 // pred_region
      %101 = vsyncadd [#allocation3], 0
      %s102 = sshll.u32 [#allocation2], 4
      %s103 = int_to_ptr.vmem [resolvable:$true] %s102
      %s104 = sshll.u32 %s2, 4
      %s105 = int_to_ptr.hbm [resolvable:$true] %s104
      %110 = dma.vmem_to_hbm [thread:$0]  %s103, 1024, %s105, [#allocation3], 128, 128, 8
    $region13: #{tpu_custom_call.1} parent=1 // pred_fallthru
      _
    // Predicated region
    $region14: #{tpu_custom_call.1} parent=1 // pred_check
      _
    $region15: #{tpu_custom_call.1} parent=1 // pred_check_branch
      %112 = sbr.rel (0) target = $region17
    $region16: #{tpu_custom_call.1} parent=1 // pred_region
      %114 = dma.done [#allocation3], 1024
    $region17: #{tpu_custom_call.1} parent=1 // pred_fallthru
      _
    %115 = vsyncpa [#allocation3], 1

</llo_original>
